<compile_context>
chip_gen: v6e
topology: v6e:2x2x1
jax: 0.10.0
libtpu: 0.0.40
codegen_flags: <defaults>
</compile_context>

<pallas_src>
import math
from functools import partial
from types import SimpleNamespace

import jax
import jax.numpy as jnp
from jax import lax
from jax.experimental import pallas as pl
from jax.experimental.pallas import tpu as pltpu


# --------------------------------------------------------------------------
# helpers
# --------------------------------------------------------------------------
def _divisor_lane(total, target):
    """Largest multiple of 128 <= target that divides `total` (or None)."""
    cand = (min(target, total) // 128) * 128
    while cand >= 128:
        if total % cand == 0:
            return cand
        cand -= 128
    return None


# --------------------------------------------------------------------------
# FocalLoss (CenterNet _neg_loss) on the sigmoid-clamped heatmap
# --------------------------------------------------------------------------
_FOCAL_CLAMP = 9.210240366975849    # log((1 - 1e-4) / 1e-4)


def _focal_kernel(x_ref, g_ref, pos_ref, neg_ref, npos_ref, *, R, ROWS, TPC, NT):
    i = pl.program_id(0)            # megacore chunk ('parallel')
    j = pl.program_id(1)            # row-tile reduction axis ('arbitrary')
    step = i * TPC + j

    @pl.when(j == 0)
    def _():
        pos_ref[...] = jnp.zeros_like(pos_ref)
        neg_ref[...] = jnp.zeros_like(neg_ref)
        npos_ref[...] = jnp.zeros_like(npos_ref)

    def accum(x, gt):
        # clamp(sigmoid(x), 1e-4, 1-1e-4) == sigmoid(clip(x, +-log(9999)))
        # -> log(pred) = -softplus(-xc), log(1-pred) = -xc - softplus(-xc)
        xc = jnp.clip(x, -_FOCAL_CLAMP, _FOCAL_CLAMP)
        e = jnp.exp(-xc)                       # EUP
        sp = jnp.log1p(e)                      # EUP: softplus(-xc)
        pred = 1.0 / (1.0 + e)
        one_m = 1.0 - pred
        pos_inds = (gt == 1.0).astype(jnp.float32)
        neg_inds = (gt < 1.0).astype(jnp.float32)
        neg_w = (1.0 - gt) ** 4
        pos_l = (-sp) * one_m * one_m * pos_inds
        neg_l = (-xc - sp) * pred * pred * neg_w * neg_inds
        # per-lane partials only (cheap sublane reduce); final reduce on host
        pos_ref[...] += jnp.sum(pos_l, axis=0, keepdims=True)[None]
        neg_ref[...] += jnp.sum(neg_l, axis=0, keepdims=True)[None]
        npos_ref[...] += jnp.sum(pos_inds, axis=0, keepdims=True)[None]

    if R % ROWS == 0:
        @pl.when(step < NT)         # P*TPC may overshoot NT by one padded step
        def _():
            accum(x_ref[...].astype(jnp.float32), g_ref[...].astype(jnp.float32))
    else:
        @pl.when(step < NT - 1)     # full tiles: no masking at all
        def _():
            accum(x_ref[...].astype(jnp.float32), g_ref[...].astype(jnp.float32))

        @pl.when(step == NT - 1)    # single ragged tail tile: mask padded rows
        def _():
            gt = g_ref[...].astype(jnp.float32)
            row = step * ROWS + lax.broadcasted_iota(jnp.int32, gt.shape, 0)
            gt = jnp.where(row < R, gt, 2.0)   # gt=2 -> pos=0, neg=0, npos=0
            accum(x_ref[...].astype(jnp.float32), gt)


def focal_loss(hm_logits, hm_gt, *, target_lane=2048, tile_bytes=2 << 20):
    B, C, H, W = hm_logits.shape
    BC, HW = B * C, H * W
    T = BC * HW

    # Lane width: 128-multiple divisor of the flat element count (ragged-lane
    # masking compiles out); keep >= 8 sublane rows when possible.
    cap = min(target_lane, max(128, (T // 8) // 128 * 128), T)
    LANE = _divisor_lane(T, cap)
    if LANE is None:                # no 128-multiple divisor: (BC, HW) layout
        LANE = HW
    R = T // LANE

    isz = jnp.dtype(hm_logits.dtype).itemsize
    # ~tile_bytes per input tile; 2 inputs x 2 pipeline buffers stays inside
    # v5e's 16 MiB scoped VMEM default (and v7x's 32 MiB scoped / 64 MiB phys).
    rows_target = max(8, (tile_bytes // (LANE * isz)) // 8 * 8)
    if R <= rows_target:
        ROWS = R
    else:
        ROWS = rows_target
        cand = rows_target
        while cand >= max(8, rows_target // 2):   # prefer an exact divisor
            if R % cand == 0:
                ROWS = cand
                break
            cand -= 8

    nT = pl.cdiv(R, ROWS)
    P = 2 if nT >= 2 else 1         # both v7x TensorCores stream the heatmap
    TPC = pl.cdiv(nT, P)

    x = hm_logits.reshape(R, LANE)  # free reshape (contiguous slab)
    g = hm_gt.reshape(R, LANE)

    def in_idx(i, j):
        return (jnp.minimum(i * TPC + j, nT - 1), 0)

    out = jax.ShapeDtypeStruct((P, 1, LANE), jnp.float32)
    pos, neg, npos = pl.pallas_call(
        partial(_focal_kernel, R=R, ROWS=ROWS, TPC=TPC, NT=nT),
        out_shape=(out, out, out),
        grid=(P, TPC),
        in_specs=[pl.BlockSpec((ROWS, LANE), in_idx),
                  pl.BlockSpec((ROWS, LANE), in_idx)],
        out_specs=(pl.BlockSpec((1, 1, LANE), lambda i, j: (i, 0, 0)),) * 3,
        compiler_params=pltpu.CompilerParams(
            dimension_semantics=("parallel", "arbitrary")),
    )(x, g)

    pos_s, neg_s, npos_s = jnp.sum(pos), jnp.sum(neg), jnp.sum(npos)
    safe = jnp.maximum(npos_s, 1.0)
    return jnp.where(npos_s == 0, -neg_s, -(pos_s + neg_s) / safe)


# --------------------------------------------------------------------------
# Fused center gathers: bezier_ctp RegL1 + wh RegL1(index_all) + ID embeddings
# grid = (B parallel, HW tiles arbitrary); one-hot MXU gathers, VMEM scratch
# accumulators, shared `index` one-hot for mov & id.
# --------------------------------------------------------------------------
def _gather_kernel(mov_ref, wh_ref, id_ref, idx_ref, idxall_ref,
                   mask_ref, mask_all_ref, tgt_mov_ref, tgt_wh_ref,
                   mov_out, wh_out, emb_out,
                   acc_mov, acc_wh, acc_id, *, C_wh, emb_scale):
    j = pl.program_id(1)
    nj = pl.num_programs(1)
    LANE = mov_ref.shape[-1]
    N = idx_ref.shape[0]
    R_wh = idxall_ref.shape[0]

    @pl.when(j == 0)
    def _():
        acc_mov[...] = jnp.zeros_like(acc_mov)
        acc_wh[...] = jnp.zeros_like(acc_wh)
        acc_id[...] = jnp.zeros_like(acc_id)
        mov_out[...] = jnp.zeros_like(mov_out)
        wh_out[...] = jnp.zeros_like(wh_out)
        emb_out[...] = jnp.zeros_like(emb_out)

    base = j * LANE
    # one-hot over this tile's lane range (indices always < HW and LANE | HW,
    # so out-of-range columns can never be selected)
    oh = (lax.broadcasted_iota(jnp.int32, (N, LANE), 1)
          == (idx_ref[...] - base)).astype(jnp.float32)            # (N, LANE)
    oh_all = (lax.broadcasted_iota(jnp.int32, (R_wh, LANE), 1)
              == (idxall_ref[...] - base)).astype(jnp.float32)     # (R_wh, LANE)

    def mxu_gather(onehot, f_ref):
        fb = f_ref[...]
        if fb.dtype == jnp.bfloat16:   # exact: each one-hot row picks one value
            onehot = onehot.astype(jnp.bfloat16)
        else:
            fb = fb.astype(jnp.float32)
        return lax.dot_general(onehot, fb, (((1,), (1,)), ((), ())),
                               preferred_element_type=jnp.float32)

    acc_mov[...] += mxu_gather(oh, mov_ref)       # (N, C_mov)
    acc_id[...] += mxu_gather(oh, id_ref)         # (N, D)
    acc_wh[...] += mxu_gather(oh_all, wh_ref)     # (R_wh, C_wh)

    @pl.when(j == nj - 1)
    def _():
        m = mask_ref[...]                                          # (N, 1)
        # RegL1 (bezier_ctp, plain `index`)
        l1_mov = jnp.sum(jnp.abs(acc_mov[...] * m - tgt_mov_ref[...] * m))
        mov_out[...] = jnp.full(mov_out.shape, l1_mov, mov_out.dtype)

        # RegL1 (wh, `index_all`): row r = n*C_wh + c keeps gathered column c
        aw = acc_wh[...]
        col = lax.broadcasted_iota(jnp.int32, aw.shape, 1)
        row = lax.broadcasted_iota(jnp.int32, aw.shape, 0)
        diag = (col == row % C_wh).astype(jnp.float32)
        pred_wh = jnp.sum(aw * diag, axis=1, keepdims=True)        # (R_wh, 1)
        ma = mask_all_ref[...]
        l1_wh = jnp.sum(jnp.abs(pred_wh * ma - tgt_wh_ref[...] * ma))
        wh_out[...] = jnp.full(wh_out.shape, l1_wh, wh_out.dtype)

        # ID embeddings: emb_scale * F.normalize(head); rows with mask==0 are
        # discarded later by the CE kernel's `valid` weighting.
        head = acc_id[...]                                         # (N, D)
        nrm = jnp.sqrt(jnp.sum(head * head, axis=-1, keepdims=True))
        emb_out[...] = (emb_scale * head / jnp.maximum(nrm, 1e-12))[None]


def fused_gather_losses(feat_mov, feat_wh, feat_id, mask, index, index_all,
                        tgt_mov, tgt_wh, emb_scale, *, lane_budget_bytes=2 << 20):
    # TODO(synk): for per-chip B == 1 on v7x, add a P chunk axis over hw tiles
    #             (like focal's) so both TensorCores stream the feature maps.
    B, C_mov, H, W = feat_mov.shape
    C_wh = feat_wh.shape[1]
    D = feat_id.shape[1]
    HW = H * W
    N = mask.shape[1]
    R_wh = N * C_wh

    fm = feat_mov.reshape(B, C_mov, HW)          # native dtypes; handled in-kernel
    fw = feat_wh.reshape(B, C_wh, HW)
    fi = feat_id.reshape(B, D, HW)

    maskf = mask.astype(jnp.float32)
    idx = index.astype(jnp.int32).reshape(B, N, 1)
    idxa = index_all.astype(jnp.int32).reshape(B, R_wh, 1)
    m_n = maskf.reshape(B, N, 1)
    m_all = jnp.broadcast_to(maskf[:, :, None], (B, N, C_wh)).reshape(B, R_wh, 1)
    tm = tgt_mov.astype(jnp.float32)                              # (B, N, C_mov)
    tw = tgt_wh.astype(jnp.float32).reshape(B, R_wh, 1)

    # lane tile from a VMEM byte budget across the three streamed feature maps
    bpl = (C_mov * jnp.dtype(feat_mov.dtype).itemsize
           + C_wh * jnp.dtype(feat_wh.dtype).itemsize
           + D * jnp.dtype(feat_id.dtype).itemsize)
    lane_target = max(128, lane_budget_bytes // max(bpl, 1))
    LANE = _divisor_lane(HW, lane_target)
    if LANE is None:
        LANE = HW                    # full spatial dim as one (unaligned) block
    nT = HW // LANE

    scal = jax.ShapeDtypeStruct((B, 1, 128), jnp.float32)
    emb_shape = jax.ShapeDtypeStruct((B, N, D), jnp.float32)

    mov_abs, wh_abs, emb = pl.pallas_call(
        partial(_gather_kernel, C_wh=C_wh, emb_scale=float(emb_scale)),
        out_shape=(scal, scal, emb_shape),
        grid=(B, nT),
        in_specs=[pl.BlockSpec((None, C_mov, LANE), lambda b, j: (b, 0, j)),
                  pl.BlockSpec((None, C_wh, LANE), lambda b, j: (b, 0, j)),
                  pl.BlockSpec((None, D, LANE), lambda b, j: (b, 0, j)),
                  pl.BlockSpec((None, N, 1), lambda b, j: (b, 0, 0)),
                  pl.BlockSpec((None, R_wh, 1), lambda b, j: (b, 0, 0)),
                  pl.BlockSpec((None, N, 1), lambda b, j: (b, 0, 0)),
                  pl.BlockSpec((None, R_wh, 1), lambda b, j: (b, 0, 0)),
                  pl.BlockSpec((None, N, C_mov), lambda b, j: (b, 0, 0)),
                  pl.BlockSpec((None, R_wh, 1), lambda b, j: (b, 0, 0))],
        out_specs=(pl.BlockSpec((1, 1, 128), lambda b, j: (b, 0, 0)),
                   pl.BlockSpec((1, 1, 128), lambda b, j: (b, 0, 0)),
                   pl.BlockSpec((1, N, D), lambda b, j: (b, 0, 0))),
        scratch_shapes=[pltpu.VMEM((N, C_mov), jnp.float32),
                        pltpu.VMEM((R_wh, C_wh), jnp.float32),
                        pltpu.VMEM((N, D), jnp.float32)],
        compiler_params=pltpu.CompilerParams(
            dimension_semantics=("parallel", "arbitrary")),
    )(fm, fw, fi, idx, idxa, m_n, m_all, tm, tw)

    # denominator: mask.unsqueeze(2).expand_as(pred).sum() == mask.sum() * C
    msum = jnp.sum(maskf)
    mov_loss = jnp.sum(mov_abs[:, 0, 0]) / (msum * C_mov + 1e-4)
    wh_loss = jnp.sum(wh_abs[:, 0, 0]) / (msum * C_wh + 1e-4)
    return mov_loss, wh_loss, emb


# --------------------------------------------------------------------------
# ID classifier + CrossEntropy(ignore_index=-1) over all B*N rows,
# nID tiled with an online logsumexp (weight never resident during streaming).
# --------------------------------------------------------------------------
def _id_ce_kernel(emb_ref, valid_ref, tgt_ref, w_ref, b_ref,
                  sum_ref, cnt_ref, m_sc, l_sc, tl_sc, *, nID):
    j = pl.program_id(0)
    nj = pl.num_programs(0)
    TN = w_ref.shape[1]

    @pl.when(j == 0)
    def _():
        m_sc[...] = jnp.full_like(m_sc, -jnp.inf)
        l_sc[...] = jnp.zeros_like(l_sc)
        tl_sc[...] = jnp.zeros_like(tl_sc)
        sum_ref[...] = jnp.zeros_like(sum_ref)
        cnt_ref[...] = jnp.zeros_like(cnt_ref)

    logits = jnp.dot(emb_ref[...], w_ref[...],
                     preferred_element_type=jnp.float32) + b_ref[...]   # (M, TN)
    cls = j * TN + lax.broadcasted_iota(jnp.int32, logits.shape, 1)
    if nID % TN != 0:               # mask padded classes on the ragged nID tail
        logits = jnp.where(cls < nID, logits, -jnp.inf)

    # capture the target-class logit when it falls in this tile
    tl_sc[...] += jnp.sum(jnp.where(cls == tgt_ref[...], logits, 0.0),
                          axis=1, keepdims=True)

    # online logsumexp
    m_new = jnp.maximum(m_sc[...], jnp.max(logits, axis=-1, keepdims=True))
    l_sc[...] = (l_sc[...] * jnp.exp(m_sc[...] - m_new)
                 + jnp.sum(jnp.exp(logits - m_new), axis=-1, keepdims=True))
    m_sc[...] = m_new

    @pl.when(j == nj - 1)
    def _():
        lse = m_sc[...] + jnp.log(l_sc[...])
        v = valid_ref[...]
        per_row = (lse - tl_sc[...]) * v
        sum_ref[...] = jnp.full(sum_ref.shape, jnp.sum(per_row), sum_ref.dtype)
        cnt_ref[...] = jnp.full(cnt_ref.shape, jnp.sum(v), cnt_ref.dtype)


def id_classifier_ce(emb, mask, id_target, classifier_w, classifier_b):
    B, N, D = emb.shape
    M = B * N
    nID = classifier_w.shape[0]

    embf = emb.reshape(M, D)
    m = mask.astype(jnp.float32).reshape(M, 1)
    t = id_target.astype(jnp.int32).reshape(M, 1)
    valid = ((m > 0) & (t != -1)).astype(jnp.float32)
    t_safe = jnp.where(valid > 0, t, 0)
    wt = classifier_w.T.astype(jnp.float32)       # (D, nID)
    bb = classifier_b.reshape(1, nID).astype(jnp.float32)

    TN = nID if nID <= 512 else 512
    nj = pl.cdiv(nID, TN)

    s, c = pl.pallas_call(
        partial(_id_ce_kernel, nID=nID),
        out_shape=(jax.ShapeDtypeStruct((1, 128), jnp.float32),
                   jax.ShapeDtypeStruct((1, 128), jnp.float32)),
        grid=(nj,),
        in_specs=[pl.BlockSpec((M, D), lambda j: (0, 0)),
                  pl.BlockSpec((M, 1), lambda j: (0, 0)),
                  pl.BlockSpec((M, 1), lambda j: (0, 0)),
                  pl.BlockSpec((D, TN), lambda j: (0, j)),
                  pl.BlockSpec((1, TN), lambda j: (0, j))],
        out_specs=(pl.BlockSpec((1, 128), lambda j: (0, 0)),
                   pl.BlockSpec((1, 128), lambda j: (0, 0))),
        scratch_shapes=[pltpu.VMEM((M, 1), jnp.float32),
                        pltpu.VMEM((M, 1), jnp.float32),
                        pltpu.VMEM((M, 1), jnp.float32)],
        compiler_params=pltpu.CompilerParams(
            dimension_semantics=("arbitrary",)),
    )(embf, valid, t_safe, wt, bb)

    tot, cnt = s[0, 0], c[0, 0]
    # guard 0/0 (PyTorch CE with every row ignored would NaN)
    return jnp.where(cnt > 0, tot / jnp.maximum(cnt, 1.0), 0.0)


# --------------------------------------------------------------------------
# MOCTrainLoss.forward
# --------------------------------------------------------------------------
def moc_train_loss(output, batch, params, opt):
    hm_loss = focal_loss(output['hm'], batch['hm'])

    use_id = bool(opt.ID_head) and opt.id_weight > 0
    emb_scale = math.sqrt(2) * math.log(opt.nID - 1) if use_id else 1.0
    if use_id:
        feat_id = output['id']
    else:   # dummy 1-channel map; its (ignored) gather costs one tiny matmul
        B_, _, H_, W_ = output['bezier_ctp'].shape
        feat_id = jnp.zeros((B_, 1, H_, W_), output['bezier_ctp'].dtype)

    mov_loss, wh_loss, emb = fused_gather_losses(
        output['bezier_ctp'], output['wh'], feat_id,
        batch['mask'], batch['index'], batch['index_all'],
        batch['bezier_ctp'], batch['wh'], emb_scale)

    loss_id = jnp.float32(0.0)
    if use_id:
        loss_id = id_classifier_ce(emb, batch['mask'], batch['id'],
                                   params['classifier_w'], params['classifier_b'])

    det_loss = (opt.hm_weight * hm_loss + opt.wh_weight * wh_loss
                + opt.mov_weight * mov_loss)
    if opt.ID_head:
        loss = (jnp.exp(-params['s_det']) * det_loss
                + jnp.exp(-params['s_id']) * loss_id
                + (params['s_det'] + params['s_id']))
        loss = loss * 0.5
    else:
        loss = det_loss

    loss = loss[None]                      # .unsqueeze(0)
    loss_stats = {'loss': loss,
                  'loss_hm': hm_loss[None],
                  'loss_bezier_ctp': mov_loss[None],
                  'loss_wh': wh_loss[None]}
    if opt.ID_head:
        loss_stats['loss_id'] = jnp.asarray(loss_id)[None]
    return loss, loss_stats


# --------------------------------------------------------------------------
# Pure-JAX references (for the in-script correctness check)
# --------------------------------------------------------------------------
def _ref_focal(x, gt):
    pred = jnp.clip(jax.nn.sigmoid(x.astype(jnp.float32)), 0.0001, 1.0 - 0.0001)
    gt = gt.astype(jnp.float32)
    pos_inds = (gt == 1.0).astype(jnp.float32)
    neg_inds = (gt < 1.0).astype(jnp.float32)
    neg_w = (1.0 - gt) ** 4
    pos_l = jnp.sum(jnp.log(pred) * (1.0 - pred) ** 2 * pos_inds)
    neg_l = jnp.sum(jnp.log(1.0 - pred) * pred ** 2 * neg_w * neg_inds)
    npos = jnp.sum(pos_inds)
    return jnp.where(npos == 0, -neg_l, -(pos_l + neg_l) / jnp.maximum(npos, 1.0))


def _ref_gather(feat, idx):
    B, C, H, W = feat.shape
    f = feat.reshape(B, C, H * W).transpose(0, 2, 1).astype(jnp.float32)  # (B,HW,C)
    if idx.ndim == 2:
        idxb = jnp.broadcast_to(idx[:, :, None], (B, idx.shape[1], C))
    else:
        idxb = idx
    return jnp.take_along_axis(f, idxb, axis=1)                            # (B,N,C)


def _ref_regl1(feat, mask, idx, tgt, index_all=None):
    pred = _ref_gather(feat, index_all if index_all is not None else idx)
    m = jnp.broadcast_to(mask[:, :, None].astype(jnp.float32), pred.shape)
    return jnp.sum(jnp.abs(pred * m - tgt * m)) / (jnp.sum(m) + 1e-4)


def _ref_id(feat, mask, idx, ids, w, b, emb_scale):
    head = _ref_gather(feat, idx)
    B, N, D = head.shape
    head = head.reshape(B * N, D)
    t = ids.reshape(B * N)
    m = mask.reshape(B * N)
    norm = jnp.sqrt(jnp.sum(head * head, axis=-1, keepdims=True))
    headn = emb_scale * head / jnp.maximum(norm, 1e-12)
    logits = headn @ w.T.astype(jnp.float32) + b.astype(jnp.float32)
    mx = jnp.max(logits, axis=-1, keepdims=True)
    lse = (mx + jnp.log(jnp.sum(jnp.exp(logits - mx), axis=-1, keepdims=True)))[:, 0]
    valid = (m > 0) & (t != -1)
    t_safe = jnp.where(valid, t, 0)
    logit_t = jnp.take_along_axis(logits, t_safe[:, None], axis=1)[:, 0]
    per = (lse - logit_t) * valid.astype(jnp.float32)
    return jnp.sum(per) / jnp.maximum(jnp.sum(valid.astype(jnp.float32)), 1.0)


def _check(name, got, want, atol=1e-2, rtol=1e-2):
    g = jnp.ravel(jnp.asarray(got))[0]
    w = jnp.ravel(jnp.asarray(want))[0]
    if not bool(jnp.allclose(g, w, atol=atol, rtol=rtol)):
        raise AssertionError(f"{name}: got {g}, want {w}")


# --------------------------------------------------------------------------
if __name__ == "__main__":
    key = jax.random.PRNGKey(0)
    keys = jax.random.split(key, 12)

    B, ncls, H, W = 2, 4, 16, 16
    HW = H * W
    N = 8            # max objects per clip
    K = 4            # frames -> wh has 2*K channels
    C_wh = 2 * K
    C_mov = 8        # bezier control-point regression channels

    opt = SimpleNamespace(hm_weight=1.0, wh_weight=0.1, mov_weight=1.0,
                          id_weight=1.0, ID_head=True, reid_dim=32, nID=20)

    output = {
        'hm': jax.random.normal(keys[0], (B, ncls, H, W), jnp.float32),
        'bezier_ctp': jax.random.normal(keys[1], (B, C_mov, H, W), jnp.float32),
        'wh': jax.random.normal(keys[2], (B, C_wh, H, W), jnp.float32),
        'id': jax.random.normal(keys[3], (B, opt.reid_dim, H, W), jnp.float32),
    }

    hm_gt = jax.random.uniform(keys[4], (B, ncls, H, W), jnp.float32, 0.0, 0.95)
    # plant a few exact positives (gt == 1) like real gaussian-peak heatmaps
    hm_gt = hm_gt.at[0, 0, 3, 5].set(1.0)
    hm_gt = hm_gt.at[0, 2, 10, 7].set(1.0)
    hm_gt = hm_gt.at[1, 1, 8, 8].set(1.0)

    mask = jnp.array([[1, 1, 1, 0, 0, 0, 0, 0],
                      [1, 1, 0, 0, 0, 0, 0, 0]], jnp.float32)
    batch = {
        'hm': hm_gt,
        'mask': mask,
        'index': jax.random.randint(keys[5], (B, N), 0, HW, jnp.int32),
        'bezier_ctp': jax.random.normal(keys[6], (B, N, C_mov), jnp.float32),
        'wh': jax.random.normal(keys[7], (B, N, C_wh), jnp.float32),
        'index_all': jax.random.randint(keys[8], (B, N, C_wh), 0, HW, jnp.int32),
        'id': jnp.where(mask > 0,
                        jax.random.randint(keys[9], (B, N), 0, opt.nID, jnp.int32),
                        -1).astype(jnp.int32),
    }

    # deterministic parameter init (mimics nn.Linear default bounds; no checkpoints)
    bound = 1.0 / math.sqrt(opt.reid_dim)
    params = {
        'classifier_w': jax.random.uniform(keys[10], (opt.nID, opt.reid_dim),
                                           jnp.float32, -bound, bound),
        'classifier_b': jax.random.uniform(keys[11], (opt.nID,),
                                           jnp.float32, -bound, bound),
        's_det': jnp.full((1,), -1.85, jnp.float32),
        's_id': jnp.full((1,), -1.05, jnp.float32),
    }

    loss, stats = moc_train_loss(output, batch, params, opt)
    jax.block_until_ready(loss)
    jax.block_until_ready(stats)

    # ---- correctness check against a pure-JAX reference ----
    hm_ref = _ref_focal(output['hm'], batch['hm'])
    mov_ref = _ref_regl1(output['bezier_ctp'], batch['mask'], batch['index'],
                         batch['bezier_ctp'])
    wh_ref = _ref_regl1(output['wh'], batch['mask'], batch['index'],
                        batch['wh'], batch['index_all'])
    emb_scale = math.sqrt(2) * math.log(opt.nID - 1)
    id_ref = _ref_id(output['id'], batch['mask'], batch['index'], batch['id'],
                     params['classifier_w'], params['classifier_b'], emb_scale)
    det_ref = (opt.hm_weight * hm_ref + opt.wh_weight * wh_ref
               + opt.mov_weight * mov_ref)
    loss_ref = 0.5 * (jnp.exp(-params['s_det']) * det_ref
                      + jnp.exp(-params['s_id']) * id_ref
                      + params['s_det'] + params['s_id'])

    _check("loss_hm", stats['loss_hm'], hm_ref)
    _check("loss_bezier_ctp", stats['loss_bezier_ctp'], mov_ref)
    _check("loss_wh", stats['loss_wh'], wh_ref)
    _check("loss_id", stats['loss_id'], id_ref)
    _check("loss", loss, loss_ref)

    print("KERNEL_OK")
</pallas_src>

<mosaic_0001>
module attributes {stable_mosaic.version = 11 : i64} {
  func.func @_focal_kernel(%arg0: i32, %arg1: i32, %arg2: memref<8x256xf32, #tpu.memory_space<vmem>>, %arg3: memref<8x256xf32, #tpu.memory_space<vmem>>, %arg4: memref<1x1x256xf32, #tpu.memory_space<vmem>>, %arg5: memref<1x1x256xf32, #tpu.memory_space<vmem>>, %arg6: memref<1x1x256xf32, #tpu.memory_space<vmem>>) attributes {dimension_semantics = [#tpu.dimension_semantics<parallel>, #tpu.dimension_semantics<arbitrary>], iteration_bounds = array<i64: 1, 1>, scalar_prefetch = 0 : i64, scratch_operands = 0 : i64, tpu.core_type = #tpu.core_type<tc>, window_params = [{transform_indices = @transform_0, window_bounds = array<i64: 8, 256>}, {transform_indices = @transform_1, window_bounds = array<i64: 8, 256>}, {transform_indices = @transform_2, window_bounds = array<i64: 1, 1, 256>}, {transform_indices = @transform_3, window_bounds = array<i64: 1, 1, 256>}, {transform_indices = @transform_4, window_bounds = array<i64: 1, 1, 256>}]} {
    %c1_i32 = arith.constant 1 : i32
    %0 = arith.muli %arg0, %c1_i32 : i32
    %1 = arith.addi %0, %arg1 : i32
    %c0_i32 = arith.constant 0 : i32
    %2 = arith.cmpi eq, %arg1, %c0_i32 : i32
    %3 = arith.extui %2 : i1 to i32
    %c0_i32_0 = arith.constant 0 : i32
    %4 = arith.cmpi ne, %3, %c0_i32_0 : i32
    scf.if %4 {
      %cst = arith.constant 0.000000e+00 : f32
      %8 = vector.broadcast %cst : f32 to vector<1x1x256xf32>
      %c0 = arith.constant 0 : index
      %c0_3 = arith.constant 0 : index
      %c0_4 = arith.constant 0 : index
      %9 = vector.load %arg4[%c0, %c0_3, %c0_4] : memref<1x1x256xf32, #tpu.memory_space<vmem>>, vector<1x1x256xf32>
      tpu.vector_store %arg4[%c0, %c0_3, %c0_4], %8 {strides = array<i32>} : memref<1x1x256xf32, #tpu.memory_space<vmem>>, vector<1x1x256xf32>,
      %cst_5 = arith.constant 0.000000e+00 : f32
      %10 = vector.broadcast %cst_5 : f32 to vector<1x1x256xf32>
      %c0_6 = arith.constant 0 : index
      %c0_7 = arith.constant 0 : index
      %c0_8 = arith.constant 0 : index
      %11 = vector.load %arg5[%c0_6, %c0_7, %c0_8] : memref<1x1x256xf32, #tpu.memory_space<vmem>>, vector<1x1x256xf32>
      tpu.vector_store %arg5[%c0_6, %c0_7, %c0_8], %10 {strides = array<i32>} : memref<1x1x256xf32, #tpu.memory_space<vmem>>, vector<1x1x256xf32>,
      %cst_9 = arith.constant 0.000000e+00 : f32
      %12 = vector.broadcast %cst_9 : f32 to vector<1x1x256xf32>
      %c0_10 = arith.constant 0 : index
      %c0_11 = arith.constant 0 : index
      %c0_12 = arith.constant 0 : index
      %13 = vector.load %arg6[%c0_10, %c0_11, %c0_12] : memref<1x1x256xf32, #tpu.memory_space<vmem>>, vector<1x1x256xf32>
      tpu.vector_store %arg6[%c0_10, %c0_11, %c0_12], %12 {strides = array<i32>} : memref<1x1x256xf32, #tpu.memory_space<vmem>>, vector<1x1x256xf32>,
    } else {
    }
    %c1_i32_1 = arith.constant 1 : i32
    %5 = arith.cmpi slt, %1, %c1_i32_1 : i32
    %6 = arith.extui %5 : i1 to i32
    %c0_i32_2 = arith.constant 0 : i32
    %7 = arith.cmpi ne, %6, %c0_i32_2 : i32
    scf.if %7 {
      %c0 = arith.constant 0 : index
      %c0_3 = arith.constant 0 : index
      %8 = vector.load %arg2[%c0, %c0_3] : memref<8x256xf32, #tpu.memory_space<vmem>>, vector<8x256xf32>
      %c0_4 = arith.constant 0 : index
      %c0_5 = arith.constant 0 : index
      %9 = vector.load %arg3[%c0_4, %c0_5] : memref<8x256xf32, #tpu.memory_space<vmem>>, vector<8x256xf32>
      %cst = arith.constant -9.210240e+00 : f32
      %cst_6 = arith.constant 9.210240e+00 : f32
      %10 = vector.broadcast %cst : f32 to vector<8x256xf32>
      %11 = arith.maximumf %10, %8 : vector<8x256xf32>
      %12 = vector.broadcast %cst_6 : f32 to vector<8x256xf32>
      %13 = arith.minimumf %12, %11 : vector<8x256xf32>
      %cst_7 = arith.constant 0.000000e+00 : f32
      %14 = vector.broadcast %cst_7 : f32 to vector<8x256xf32>
      %15 = arith.subf %14, %13 : vector<8x256xf32>
      %16 = math.exp %15 : vector<8x256xf32>
      %17 = math.log1p %16 : vector<8x256xf32>
      %cst_8 = arith.constant 1.000000e+00 : f32
      %18 = vector.broadcast %cst_8 : f32 to vector<8x256xf32>
      %19 = arith.addf %18, %16 : vector<8x256xf32>
      %cst_9 = arith.constant 1.000000e+00 : f32
      %20 = vector.broadcast %cst_9 : f32 to vector<8x256xf32>
      %21 = arith.divf %20, %19 : vector<8x256xf32>
      %cst_10 = arith.constant 1.000000e+00 : f32
      %22 = vector.broadcast %cst_10 : f32 to vector<8x256xf32>
      %23 = arith.subf %22, %21 : vector<8x256xf32>
      %cst_11 = arith.constant 1.000000e+00 : f32
      %24 = vector.broadcast %cst_11 : f32 to vector<8x256xf32>
      %25 = arith.cmpf oeq, %9, %24 : vector<8x256xf32>
      %26 = arith.extui %25 : vector<8x256xi1> to vector<8x256xi32>
      %27 = arith.sitofp %26 : vector<8x256xi32> to vector<8x256xf32>
      %cst_12 = arith.constant 1.000000e+00 : f32
      %28 = vector.broadcast %cst_12 : f32 to vector<8x256xf32>
      %29 = arith.cmpf olt, %9, %28 : vector<8x256xf32>
      %30 = arith.extui %29 : vector<8x256xi1> to vector<8x256xi32>
      %31 = arith.sitofp %30 : vector<8x256xi32> to vector<8x256xf32>
      %cst_13 = arith.constant 1.000000e+00 : f32
      %32 = vector.broadcast %cst_13 : f32 to vector<8x256xf32>
      %33 = arith.subf %32, %9 : vector<8x256xf32>
      %34 = arith.mulf %33, %33 : vector<8x256xf32>
      %35 = arith.mulf %34, %34 : vector<8x256xf32>
      %cst_14 = arith.constant 0.000000e+00 : f32
      %36 = vector.broadcast %cst_14 : f32 to vector<8x256xf32>
      %37 = arith.subf %36, %17 : vector<8x256xf32>
      %38 = arith.mulf %37, %23 : vector<8x256xf32>
      %39 = arith.mulf %38, %23 : vector<8x256xf32>
      %40 = arith.mulf %39, %27 : vector<8x256xf32>
      %cst_15 = arith.constant 0.000000e+00 : f32
      %41 = vector.broadcast %cst_15 : f32 to vector<8x256xf32>
      %42 = arith.subf %41, %13 : vector<8x256xf32>
      %43 = arith.subf %42, %17 : vector<8x256xf32>
      %44 = arith.mulf %43, %21 : vector<8x256xf32>
      %45 = arith.mulf %44, %21 : vector<8x256xf32>
      %46 = arith.mulf %45, %35 : vector<8x256xf32>
      %47 = arith.mulf %46, %31 : vector<8x256xf32>
      %c0_16 = arith.constant 0 : index
      %c0_17 = arith.constant 0 : index
      %c0_18 = arith.constant 0 : index
      %48 = vector.load %arg4[%c0_16, %c0_17, %c0_18] : memref<1x1x256xf32, #tpu.memory_space<vmem>>, vector<1x1x256xf32>
      %cst_19 = arith.constant dense<0.000000e+00> : vector<256xf32>
      %49 = vector.multi_reduction <add>, %40, %cst_19 [0] : vector<8x256xf32> to vector<256xf32>
      %50 = vector.shape_cast %49 : vector<256xf32> to vector<1x256xf32>
      %51 = vector.shape_cast %50 : vector<1x256xf32> to vector<1x1x256xf32>
      %52 = arith.addf %48, %51 : vector<1x1x256xf32>
      %c0_20 = arith.constant 0 : index
      %c0_21 = arith.constant 0 : index
      %c0_22 = arith.constant 0 : index
      %53 = vector.load %arg4[%c0_20, %c0_21, %c0_22] : memref<1x1x256xf32, #tpu.memory_space<vmem>>, vector<1x1x256xf32>
      tpu.vector_store %arg4[%c0_20, %c0_21, %c0_22], %52 {strides = array<i32>} : memref<1x1x256xf32, #tpu.memory_space<vmem>>, vector<1x1x256xf32>,
      %c0_23 = arith.constant 0 : index
      %c0_24 = arith.constant 0 : index
      %c0_25 = arith.constant 0 : index
      %54 = vector.load %arg5[%c0_23, %c0_24, %c0_25] : memref<1x1x256xf32, #tpu.memory_space<vmem>>, vector<1x1x256xf32>
      %cst_26 = arith.constant dense<0.000000e+00> : vector<256xf32>
      %55 = vector.multi_reduction <add>, %47, %cst_26 [0] : vector<8x256xf32> to vector<256xf32>
      %56 = vector.shape_cast %55 : vector<256xf32> to vector<1x256xf32>
      %57 = vector.shape_cast %56 : vector<1x256xf32> to vector<1x1x256xf32>
      %58 = arith.addf %54, %57 : vector<1x1x256xf32>
      %c0_27 = arith.constant 0 : index
      %c0_28 = arith.constant 0 : index
      %c0_29 = arith.constant 0 : index
      %59 = vector.load %arg5[%c0_27, %c0_28, %c0_29] : memref<1x1x256xf32, #tpu.memory_space<vmem>>, vector<1x1x256xf32>
      tpu.vector_store %arg5[%c0_27, %c0_28, %c0_29], %58 {strides = array<i32>} : memref<1x1x256xf32, #tpu.memory_space<vmem>>, vector<1x1x256xf32>,
      %c0_30 = arith.constant 0 : index
      %c0_31 = arith.constant 0 : index
      %c0_32 = arith.constant 0 : index
      %60 = vector.load %arg6[%c0_30, %c0_31, %c0_32] : memref<1x1x256xf32, #tpu.memory_space<vmem>>, vector<1x1x256xf32>
      %cst_33 = arith.constant dense<0.000000e+00> : vector<256xf32>
      %61 = vector.multi_reduction <add>, %27, %cst_33 [0] : vector<8x256xf32> to vector<256xf32>
      %62 = vector.shape_cast %61 : vector<256xf32> to vector<1x256xf32>
      %63 = vector.shape_cast %62 : vector<1x256xf32> to vector<1x1x256xf32>
      %64 = arith.addf %60, %63 : vector<1x1x256xf32>
      %c0_34 = arith.constant 0 : index
      %c0_35 = arith.constant 0 : index
      %c0_36 = arith.constant 0 : index
      %65 = vector.load %arg6[%c0_34, %c0_35, %c0_36] : memref<1x1x256xf32, #tpu.memory_space<vmem>>, vector<1x1x256xf32>
      tpu.vector_store %arg6[%c0_34, %c0_35, %c0_36], %64 {strides = array<i32>} : memref<1x1x256xf32, #tpu.memory_space<vmem>>, vector<1x1x256xf32>,
    } else {
    }
    return
  }
  func.func @transform_0(%arg0: i32, %arg1: i32) -> (i32, i32) {
    %c1_i32 = arith.constant 1 : i32
    %0 = arith.muli %arg0, %c1_i32 : i32
    %1 = arith.addi %0, %arg1 : i32
    %c0_i32 = arith.constant 0 : i32
    %2 = arith.minsi %1, %c0_i32 : i32
    %c0_i32_0 = arith.constant 0 : i32
    %c0_i32_1 = arith.constant 0 : i32
    return %2, %c0_i32_0 : i32, i32
  }
  func.func @transform_1(%arg0: i32, %arg1: i32) -> (i32, i32) {
    %c1_i32 = arith.constant 1 : i32
    %0 = arith.muli %arg0, %c1_i32 : i32
    %1 = arith.addi %0, %arg1 : i32
    %c0_i32 = arith.constant 0 : i32
    %2 = arith.minsi %1, %c0_i32 : i32
    %c0_i32_0 = arith.constant 0 : i32
    %c0_i32_1 = arith.constant 0 : i32
    return %2, %c0_i32_0 : i32, i32
  }
  func.func @transform_2(%arg0: i32, %arg1: i32) -> (i32, i32, i32) {
    %c0_i32 = arith.constant 0 : i32
    %c0_i32_0 = arith.constant 0 : i32
    %c0_i32_1 = arith.constant 0 : i32
    return %arg0, %c0_i32, %c0_i32_0 : i32, i32, i32
  }
  func.func @transform_3(%arg0: i32, %arg1: i32) -> (i32, i32, i32) {
    %c0_i32 = arith.constant 0 : i32
    %c0_i32_0 = arith.constant 0 : i32
    %c0_i32_1 = arith.constant 0 : i32
    return %arg0, %c0_i32, %c0_i32_0 : i32, i32, i32
  }
  func.func @transform_4(%arg0: i32, %arg1: i32) -> (i32, i32, i32) {
    %c0_i32 = arith.constant 0 : i32
    %c0_i32_0 = arith.constant 0 : i32
    %c0_i32_1 = arith.constant 0 : i32
    return %arg0, %c0_i32, %c0_i32_0 : i32, i32, i32
  }
}

</mosaic_0001>

<llo_original>
// kernel: tpu_custom_call.1
$region0: #{tpu_custom_call.1}
  #allocation0 [shape = 'u32[]', space=smem, size = 0x4, offset = 0x4, fixed_abs, tag = 'smem constant byte address 0x4 - core index']
  #allocation1 [shape = 'u32[144,128]{1,0:T(1,128)}', space=vmem, size = 0x12000, scoped, tag = 'internal scratch']
  %s0 = inlined_call_operand.hbm [shape: f32[8,256], index: 0, kind: input, shape index: {}]
  %s1 = inlined_call_operand.hbm [shape: f32[8,256], index: 1, kind: input, shape index: {}]
  %s2 = inlined_call_operand.hbm [shape: f32[1,1,256], index: 2, kind: output, shape index: {0}]
  %s3 = inlined_call_operand.hbm [shape: f32[1,1,256], index: 3, kind: output, shape index: {1}]
  %s4 = inlined_call_operand.hbm [shape: f32[1,1,256], index: 4, kind: output, shape index: {2}]
  %5 = xla_tuple %s2, %s3, %s4
  %s6 = sld [smem:[#allocation0]]
  $region50: #{tpu_custom_call.1} parent=0
    _
  %s8 = ssub.s32 1, %s6
  %s9 = scalar_select 0, %s8, %s6
  $region1: #{tpu_custom_call.1} parent=0
    #allocation2 [shape = 'u8[8192]{0}', space=vmem, size = 0x2000, scoped, tag = 'input window, operand 0, single buffered']
    #allocation3 [shape = 's32[1]{0}', space=sflag, size = 0x4, scoped, tag = 'scoped memory for tpu_custom_call.1']
    #allocation4 [shape = 's32[1]{0}', space=sflag, size = 0x4, scoped, tag = 'scoped memory for tpu_custom_call.1']
    #allocation5 [shape = 'u8[8192]{0}', space=vmem, size = 0x2000, scoped, tag = 'input window, operand 1, single buffered']
    #allocation6 [shape = 's32[1]{0}', space=sflag, size = 0x4, scoped, tag = 'scoped memory for tpu_custom_call.1']
    #allocation7 [shape = 'u8[1024]{0}', space=vmem, size = 0x400, scoped, tag = 'output window, operand 0, single buffered']
    #allocation8 [shape = 'u8[1024]{0}', space=vmem, size = 0x400, scoped, tag = 'output window, operand 1, single buffered']
    #allocation9 [shape = 's32[1]{0}', space=sflag, size = 0x4, scoped, tag = 'scoped memory for tpu_custom_call.1']
    #allocation10 [shape = 'u8[1024]{0}', space=vmem, size = 0x400, scoped, tag = 'output window, operand 2, single buffered']
    %10 = vsyncpa [#allocation3], 0
    %11 = vsyncpa [#allocation6], 0
    %12 = vsyncpa [#allocation4], 0
    %13 = vsyncpa [#allocation9], 0
    // Predicated region
    $region2: #{tpu_custom_call.1} parent=1 // pred_check
      _
    $region3: #{tpu_custom_call.1} parent=1 // pred_check_branch
      %15 = sbr.rel (0) target = $region5
    $region4: #{tpu_custom_call.1} parent=1 // pred_region
      %s16 = sadd.s32 0, 0
      %p17 = scmp.lt.s32.totalorder %s16, 0
      %s18 = scalar_select %p17, %s16, 0
      %s20 = ssub.s32 256, 256
      %21 = vsyncadd [#allocation3], %s20
      %s22 = smul.addr %s18, 2
      %s23 = smul.addr %s22, 128
      %s24 = scalar_lea.hbm %s0, %s23
      %s26 = sshll.u32 [#allocation2], 4
      %s27 = int_to_ptr.vmem [resolvable:$true] %s26
      %29 = dma.hbm_to_vmem [thread:$0]  %s24, 256, %s27, [#allocation3]
    $region5: #{tpu_custom_call.1} parent=1 // pred_fallthru
      _
    // Predicated region
    $region6: #{tpu_custom_call.1} parent=1 // pred_check
      _
    $region7: #{tpu_custom_call.1} parent=1 // pred_check_branch
      %31 = sbr.rel (0) target = $region9
    $region8: #{tpu_custom_call.1} parent=1 // pred_region
      %s32 = sadd.s32 0, 0
      %p33 = scmp.lt.s32.totalorder %s32, 0
      %s34 = scalar_select %p33, %s32, 0
      %s36 = ssub.s32 256, 256
      %37 = vsyncadd [#allocation6], %s36
      %s38 = smul.addr %s34, 2
      %s39 = smul.addr %s38, 128
      %s40 = scalar_lea.hbm %s1, %s39
      %s42 = sshll.u32 [#allocation5], 4
      %s43 = int_to_ptr.vmem [resolvable:$true] %s42
      %45 = dma.hbm_to_vmem [thread:$0]  %s40, 256, %s43, [#allocation6]
    $region9: #{tpu_custom_call.1} parent=1 // pred_fallthru
      _
    // Predicated region
    $region10: #{tpu_custom_call.1} parent=1 // pred_check
      _
    $region11: #{tpu_custom_call.1} parent=1 // pred_check_branch
      %47 = sbr.rel (0) target = $region13
    $region12: #{tpu_custom_call.1} parent=1 // pred_region
      %48 = dma.done [#allocation3], 256
    $region13: #{tpu_custom_call.1} parent=1 // pred_fallthru
      _
    // Predicated region
    $region14: #{tpu_custom_call.1} parent=1 // pred_check
      _
    $region15: #{tpu_custom_call.1} parent=1 // pred_check_branch
      %50 = sbr.rel (0) target = $region17
    $region16: #{tpu_custom_call.1} parent=1 // pred_region
      %51 = dma.done [#allocation6], 256
    $region17: #{tpu_custom_call.1} parent=1 // pred_fallthru
      _
    %s52 = sadd.s32 0, 0
    %p53 = scmp.lt.s32.totalorder %s52, 0
    %s54 = scalar_select %p53, %s52, 0
    %s55 = sadd.s32 0, 0
    %p56 = scmp.lt.s32.totalorder %s55, 0
    %s57 = scalar_select %p56, %s55, 0
    %s58 = sadd.s32 0, 0
    %p59 = scmp.eq.s32.totalorder 0, 0
    // Predicated region
    $region18: #{tpu_custom_call.1} parent=1 // pred_check
      %p60 = pneg %p59
    $region19: #{tpu_custom_call.1} parent=1 // pred_check_branch
      %62 = sbr.rel (%p60) target = $region21
    $region20: #{tpu_custom_call.1} parent=1 // pred_region
      %v63 = vlaneseq
      %vm64 = vcmp.ge.s32.totalorder %v63, 0
      %vm65 = vcmp.lt.s32.totalorder %v63, 256
      %vm66 = vmand %vm64, %vm65
      %67 = vst.msk [vmem:[#allocation7] sm:$0x3] %vm66, 0.0
      %68 = vst.msk [vmem:[#allocation8] sm:$0x3] %vm66, 0.0
      %69 = vst.msk [vmem:[#allocation10] sm:$0x3] %vm66, 0.0
    $region21: #{tpu_custom_call.1} parent=1 // pred_fallthru
      _
    %p70 = scmp.lt.s32.totalorder %s58, 1
    // Predicated region
    $region22: #{tpu_custom_call.1} parent=1 // pred_check
      %p71 = pneg %p70
    $region23: #{tpu_custom_call.1} parent=1 // pred_check_branch
      %73 = sbr.rel (%p71) target = $region25
    $region24: #{tpu_custom_call.1} parent=1 // pred_region
      %v74 = vld [vmem:[#allocation2] sm:$0xff]
      %v75 = vld [vmem:[#allocation2 + $0x8] sm:$0xff]
      %v76 = vld [vmem:[#allocation5] sm:$0xff]
      %v77 = vld [vmem:[#allocation5 + $0x8] sm:$0xff]
      %v78 = vmax.f32 %v74, -9.21024
      %v79 = vmax.f32 %v75, -9.21024
      %v80 = vmin.f32 %v78, 9.21024
      %v81 = vmin.f32 %v79, 9.21024
      %v82 = vsub.f32 0.0, %v80
      %v83 = vsub.f32 0.0, %v81
      %v84 = vmul.f32 %v82, 1.442695
      %v85 = vpow.pop %v84
      %v86 = vmul.f32 %v83, 1.442695
      %v87 = vpow.pop %v86
      %v88 = vadd.f32 %v85, 1.0
      %v89 = vlog2.pop %v88
      %v90 = vmul.f32 %v89, 0.6931472
      %v91 = vmul.f32 -0.5, %v85
      %v92 = vadd.f32 %v91, 1.0
      %v93 = vmul.f32 %v92, %v85
      %v94 = vand.u32 2147483647, %v85
      %vm95 = vcmp.lt.f32.partialorder %v94, 0.0004427343
      %v96 = vsel %vm95, %v93, %v90
      %v97 = vadd.f32 %v87, 1.0
      %v98 = vlog2.pop %v97
      %v99 = vmul.f32 %v98, 0.6931472
      %v100 = vmul.f32 -0.5, %v87
      %v101 = vadd.f32 %v100, 1.0
      %v102 = vmul.f32 %v101, %v87
      %v103 = vand.u32 2147483647, %v87
      %vm104 = vcmp.lt.f32.partialorder %v103, 0.0004427343
      %v105 = vsel %vm104, %v102, %v99
      %v106 = vadd.f32 %v85, 1.0
      %v107 = vadd.f32 %v87, 1.0
      %v108 = vrcp.pop %v106
      %v109 = vmul.f32 1.0, %v108
      %v110 = vrcp.pop %v107
      %v111 = vmul.f32 1.0, %v110
      %v112 = vsub.f32 1.0, %v109
      %v113 = vsub.f32 1.0, %v111
      %vm114 = vcmp.eq.f32.partialorder %v76, 1.0
      %vm115 = vcmp.eq.f32.partialorder %v77, 1.0
      %v116 = vsel %vm114, 1, 0
      %v117 = vsel %vm115, 1, 0
      %v118 = vcvt.s32.f32 %v116
      %v119 = vcvt.s32.f32 %v117
      %vm120 = vcmp.lt.f32.partialorder %v76, 1.0
      %vm121 = vcmp.lt.f32.partialorder %v77, 1.0
      %v122 = vsel %vm120, 1, 0
      %v123 = vsel %vm121, 1, 0
      %v124 = vcvt.s32.f32 %v122
      %v125 = vcvt.s32.f32 %v123
      %v126 = vsub.f32 1.0, %v76
      %v127 = vsub.f32 1.0, %v77
      %v128 = vmul.f32 %v126, %v126
      %v129 = vmul.f32 %v127, %v127
      %v130 = vmul.f32 %v128, %v128
      %v131 = vmul.f32 %v129, %v129
      %v132 = vsub.f32 0.0, %v96
      %v133 = vsub.f32 0.0, %v105
      %v134 = vmul.f32 %v132, %v112
      %v135 = vmul.f32 %v133, %v113
      %v136 = vmul.f32 %v134, %v112
      %v137 = vmul.f32 %v135, %v113
      %v138 = vmul.f32 %v136, %v118
      %v139 = vmul.f32 %v137, %v119
      %v140 = vsub.f32 %v82, %v96
      %v141 = vsub.f32 %v83, %v105
      %v142 = vmul.f32 %v140, %v109
      %v143 = vmul.f32 %v141, %v111
      %v144 = vmul.f32 %v142, %v109
      %v145 = vmul.f32 %v143, %v111
      %v146 = vmul.f32 %v144, %v130
      %v147 = vmul.f32 %v145, %v131
      %v148 = vmul.f32 %v146, %v124
      %v149 = vmul.f32 %v147, %v125
      %v150 = vld [vmem:[#allocation7] sm:$0x3]
      %v151 = vrot.slane %v138, 4
      %v152 = vadd.f32 %v138, %v151
      %v153 = vrot.slane %v152, 2
      %v154 = vadd.f32 %v152, %v153
      %v155 = vrot.slane %v154, 1
      %v156 = vadd.f32 %v154, %v155
      %v157 = vrot.slane %v139, 4
      %v158 = vadd.f32 %v139, %v157
      %v159 = vrot.slane %v158, 2
      %v160 = vadd.f32 %v158, %v159
      %v161 = vrot.slane %v160, 1
      %v162 = vadd.f32 %v160, %v161
      %v165 = vcombine.low %v156, %v162
      %v167 = vunpack.c.l.s4 1966171168
      %v168 = vunpack.c.0.s8 %v167
      %v169 = vlaneseq
      %v170 = vshrl.u32 %v169, 7
      %v171 = vsub.s32 %v168, %v170
      %v172 = vrot.slane %v165, %v171
      %v174 = vunpack.c.l.s4 1966171168
      %v175 = vunpack.c.0.s8 %v174
      %v176 = vlaneseq
      %v177 = vshrl.u32 %v176, 7
      %v178 = vsub.s32 %v175, %v177
      %v179 = vrot.slane %v172, %v178
      %v181 = vadd.f32 %v150, %v179
      %v182 = vlaneseq
      %vm183 = vcmp.ge.s32.totalorder %v182, 0
      %vm184 = vcmp.lt.s32.totalorder %v182, 256
      %vm185 = vmand %vm183, %vm184
      %186 = vst.msk [vmem:[#allocation7] sm:$0x3] %vm185, %v181
      %v187 = vld [vmem:[#allocation8] sm:$0x3]
      %v188 = vrot.slane %v148, 4
      %v189 = vadd.f32 %v148, %v188
      %v190 = vrot.slane %v189, 2
      %v191 = vadd.f32 %v189, %v190
      %v192 = vrot.slane %v191, 1
      %v193 = vadd.f32 %v191, %v192
      %v194 = vrot.slane %v149, 4
      %v195 = vadd.f32 %v149, %v194
      %v196 = vrot.slane %v195, 2
      %v197 = vadd.f32 %v195, %v196
      %v198 = vrot.slane %v197, 1
      %v199 = vadd.f32 %v197, %v198
      %v202 = vcombine.low %v193, %v199
      %v204 = vunpack.c.l.s4 1966171168
      %v205 = vunpack.c.0.s8 %v204
      %v206 = vlaneseq
      %v207 = vshrl.u32 %v206, 7
      %v208 = vsub.s32 %v205, %v207
      %v209 = vrot.slane %v202, %v208
      %v211 = vunpack.c.l.s4 1966171168
      %v212 = vunpack.c.0.s8 %v211
      %v213 = vlaneseq
      %v214 = vshrl.u32 %v213, 7
      %v215 = vsub.s32 %v212, %v214
      %v216 = vrot.slane %v209, %v215
      %v218 = vadd.f32 %v187, %v216
      %219 = vst.msk [vmem:[#allocation8] sm:$0x3] %vm185, %v218
      %v220 = vld [vmem:[#allocation10] sm:$0x3]
      %v221 = vrot.slane %v118, 4
      %v222 = vadd.f32 %v118, %v221
      %v223 = vrot.slane %v222, 2
      %v224 = vadd.f32 %v222, %v223
      %v225 = vrot.slane %v224, 1
      %v226 = vadd.f32 %v224, %v225
      %v227 = vrot.slane %v119, 4
      %v228 = vadd.f32 %v119, %v227
      %v229 = vrot.slane %v228, 2
      %v230 = vadd.f32 %v228, %v229
      %v231 = vrot.slane %v230, 1
      %v232 = vadd.f32 %v230, %v231
      %v235 = vcombine.low %v226, %v232
      %v237 = vunpack.c.l.s4 1966171168
      %v238 = vunpack.c.0.s8 %v237
      %v239 = vlaneseq
      %v240 = vshrl.u32 %v239, 7
      %v241 = vsub.s32 %v238, %v240
      %v242 = vrot.slane %v235, %v241
      %v244 = vunpack.c.l.s4 1966171168
      %v245 = vunpack.c.0.s8 %v244
      %v246 = vlaneseq
      %v247 = vshrl.u32 %v246, 7
      %v248 = vsub.s32 %v245, %v247
      %v249 = vrot.slane %v242, %v248
      %v251 = vadd.f32 %v220, %v249
      %252 = vst.msk [vmem:[#allocation10] sm:$0x3] %vm185, %v251
    $region25: #{tpu_custom_call.1} parent=1 // pred_fallthru
      _
    // Predicated region
    $region26: #{tpu_custom_call.1} parent=1 // pred_check
      _
    $region27: #{tpu_custom_call.1} parent=1 // pred_check_branch
      %254 = sbr.rel (0) target = $region29
    $region28: #{tpu_custom_call.1} parent=1 // pred_region
      %s256 = ssub.s32 32, 32
      %257 = vsyncadd [#allocation4], %s256
      %s259 = sshll.u32 [#allocation7], 4
      %s260 = int_to_ptr.vmem [resolvable:$true] %s259
      %262 = dma.vmem_to_hbm [thread:$0]  %s260, 32, %s2, [#allocation4]
    $region29: #{tpu_custom_call.1} parent=1 // pred_fallthru
      _
    // Predicated region
    $region30: #{tpu_custom_call.1} parent=1 // pred_check
      _
    $region31: #{tpu_custom_call.1} parent=1 // pred_check_branch
      %264 = sbr.rel (0) target = $region33
    $region32: #{tpu_custom_call.1} parent=1 // pred_region
      %s266 = ssub.s32 32, 32
      %267 = vsyncadd [#allocation9], %s266
      %s269 = sshll.u32 [#allocation8], 4
      %s270 = int_to_ptr.vmem [resolvable:$true] %s269
      %272 = dma.vmem_to_hbm [thread:$0]  %s270, 32, %s3, [#allocation9]
    $region33: #{tpu_custom_call.1} parent=1 // pred_fallthru
      _
    // Predicated region
    $region34: #{tpu_custom_call.1} parent=1 // pred_check
      _
    $region35: #{tpu_custom_call.1} parent=1 // pred_check_branch
      %274 = sbr.rel (0) target = $region37
    $region36: #{tpu_custom_call.1} parent=1 // pred_region
      %s276 = ssub.s32 32, 32
      %277 = vsyncadd [#allocation9], %s276
      %s279 = sshll.u32 [#allocation10], 4
      %s280 = int_to_ptr.vmem [resolvable:$true] %s279
      %282 = dma.vmem_to_hbm [thread:$0]  %s280, 32, %s4, [#allocation9]
    $region37: #{tpu_custom_call.1} parent=1 // pred_fallthru
      _
    // Predicated region
    $region38: #{tpu_custom_call.1} parent=1 // pred_check
      _
    $region39: #{tpu_custom_call.1} parent=1 // pred_check_branch
      %284 = sbr.rel (0) target = $region41
    $region40: #{tpu_custom_call.1} parent=1 // pred_region
      %285 = dma.done [#allocation4], 32
    $region41: #{tpu_custom_call.1} parent=1 // pred_fallthru
      _
    // Predicated region
    $region42: #{tpu_custom_call.1} parent=1 // pred_check
      _
    $region43: #{tpu_custom_call.1} parent=1 // pred_check_branch
      %287 = sbr.rel (0) target = $region45
    $region44: #{tpu_custom_call.1} parent=1 // pred_region
      %288 = dma.done [#allocation9], 32
    $region45: #{tpu_custom_call.1} parent=1 // pred_fallthru
      _
    // Predicated region
    $region46: #{tpu_custom_call.1} parent=1 // pred_check
      _
    $region47: #{tpu_custom_call.1} parent=1 // pred_check_branch
      %290 = sbr.rel (0) target = $region49
    $region48: #{tpu_custom_call.1} parent=1 // pred_region
      %291 = dma.done [#allocation9], 32
    $region49: #{tpu_custom_call.1} parent=1 // pred_fallthru
      _
    %292 = vsyncpa [#allocation3], 1
    %293 = vsyncpa [#allocation6], 1
    %294 = vsyncpa [#allocation4], 1
    %295 = vsyncpa [#allocation9], 1

</llo_original>
